<compile_context>
chip_gen: v7x
topology: tpu7x:2x2x1
jax: 0.10.0
libtpu: 0.0.40
codegen_flags: <defaults>
</compile_context>

<pallas_src>
import jax
import jax.numpy as jnp
import numpy as np
from jax import lax
from jax.experimental import pallas as pl
from jax.experimental.pallas import tpu as pltpu


# ---------------------------------------------------------------------------
# Generation-aware sizing helpers
# ---------------------------------------------------------------------------
def _vmem_limit_bytes():
    """~75% of physical per-core VMEM: 96 MiB on v5e/v6e (128 MiB), 48 MiB on v7x (64 MiB)."""
    try:
        phys = int(pltpu.get_tpu_info().vmem_capacity_bytes)
    except Exception:
        phys = 64 * 1024 * 1024          # conservative (v7x-sized) fallback
    return (phys * 3) // 4


def _pick_tile_s(S_pad, C, itemsize, budget_bytes, n_big_bufs):
    """Largest multiple-of-128 divisor of S_pad whose big (C, TS) buffers fit the budget.

    n_big_bufs = number of double-buffered (C, TS)-sized tiles the pass keeps live
    (2 for the stats pass: input only; 4 for the project pass: input + output)."""
    cap = budget_bytes // max(1, n_big_bufs * C * itemsize)
    cap = max(128, cap - cap % 128)
    best, t = 128, 128
    limit = min(S_pad, cap)
    while t <= limit:
        if S_pad % t == 0:
            best = t
        t += 128
    return best


# ---------------------------------------------------------------------------
# Pallas kernels
# ---------------------------------------------------------------------------
def _coritn_stats_kernel(x_ref, sum_ref, gram_ref):
    """Pass 1: accumulate per-sample sum(x) (C,1) and Gram x @ x^T (C,C) over S tiles."""
    @pl.when(pl.program_id(1) == 0)
    def _init():
        sum_ref[...] = jnp.zeros_like(sum_ref)
        gram_ref[...] = jnp.zeros_like(gram_ref)

    x = x_ref[...]                                            # (C, TS), native dtype
    # Row sums with f32 accumulation (cast feeds only the reduce; Gram stays native).
    sum_ref[...] += jnp.sum(x.astype(jnp.float32), axis=-1, keepdims=True)
    # Gram without materializing x.T: contract the lane axis of both operands (MXU).
    gram_ref[...] += lax.dot_general(
        x, x,
        dimension_numbers=(((1,), (1,)), ((), ())),
        preferred_element_type=jnp.float32)


def _coritn_project_kernel(x_ref, proj_ref, bias_ref, xn_ref):
    """Pass 2 / eval: xn_tile = proj @ x_tile - bias, with bias = proj @ mean."""
    x = x_ref[...]
    if x.dtype != proj_ref.dtype:                             # trace-time branch
        x = x.astype(proj_ref.dtype)
    xn = jnp.dot(proj_ref[...], x, preferred_element_type=jnp.float32) - bias_ref[...]
    xn_ref[...] = xn.astype(xn_ref.dtype)


# ---------------------------------------------------------------------------
# pallas_call wrappers
# ---------------------------------------------------------------------------
def _run_stats(x3, tile_s, vmem_limit):
    N, C, S_pad = x3.shape
    grid = (N, S_pad // tile_s)
    return pl.pallas_call(
        _coritn_stats_kernel,
        grid=grid,
        in_specs=[pl.BlockSpec((None, C, tile_s), lambda n, s: (n, 0, s))],
        out_specs=(
            pl.BlockSpec((None, C, 1), lambda n, s: (n, 0, 0)),   # per-sample partial sum
            pl.BlockSpec((None, C, C), lambda n, s: (n, 0, 0)),   # per-sample partial Gram
        ),
        out_shape=(
            jax.ShapeDtypeStruct((N, C, 1), jnp.float32),
            jax.ShapeDtypeStruct((N, C, C), jnp.float32),
        ),
        compiler_params=pltpu.CompilerParams(
            dimension_semantics=("parallel", "arbitrary"),   # N split across cores (v7x)
            vmem_limit_bytes=vmem_limit),
    )(x3)


def _run_project(x3, proj, bias, tile_s, out_dtype, vmem_limit):
    N, C, S_pad = x3.shape
    grid = (N, S_pad // tile_s)
    return pl.pallas_call(
        _coritn_project_kernel,
        grid=grid,
        in_specs=[
            pl.BlockSpec((None, C, tile_s), lambda n, s: (n, 0, s)),
            pl.BlockSpec((C, C), lambda n, s: (0, 0)),       # resident projection
            pl.BlockSpec((C, 1), lambda n, s: (0, 0)),       # resident bias = proj @ mean
        ],
        out_specs=pl.BlockSpec((None, C, tile_s), lambda n, s: (n, 0, s)),
        out_shape=jax.ShapeDtypeStruct((N, C, S_pad), out_dtype),
        compiler_params=pltpu.CompilerParams(
            dimension_semantics=("parallel", "parallel"),    # independent tiles (megacore)
            vmem_limit_bytes=vmem_limit),
    )(x3, proj, bias)


# ---------------------------------------------------------------------------
# Tiny finalize on the combined partials (O(C^2) work, plain JAX)
# ---------------------------------------------------------------------------
def _finalize_stats(psum, pgram, m, *, eps, eps_bn, T):
    C = psum.shape[1]
    total_sum = jnp.sum(psum, axis=0)                         # (C, 1)
    gram = jnp.sum(pgram, axis=0)                             # (C, C)
    eye = jnp.eye(C, dtype=jnp.float32)
    mean = total_sum / m
    # Sum_i (x_i - mean)(x_i - mean)^T = Gram - m * mean mean^T
    # TODO(synk): subtract a pilot per-channel mean before accumulation (compensated
    # single-pass covariance) if |mean| >> std at very large m.
    xc_gram = gram - m * (mean * mean.reshape(1, C))
    var = jnp.diagonal(xc_gram).reshape(C, 1) / (m - 1)       # torch.std default: unbiased
    std_inv = 1.0 / (jnp.sqrt(var) + eps_bn)                  # (C, 1)
    # torch.addmm(eps*I, xcs, xcs.T, beta=1/m) -> sigma = (eps/m)*I + xcs @ xcs^T
    sigma = (eps / m) * eye + std_inv * xc_gram * std_inv.reshape(1, C)
    trace_inv = 1.0 / jnp.trace(sigma)
    sigma_n = sigma * trace_inv
    # torch.addmm(1.5*P, P^3, sigma_N, beta=-0.5) -> P <- -0.75*P + P^3 @ sigma_N
    P = eye
    for _ in range(T):
        P = -0.75 * P + P @ P @ P @ sigma_n
    wm = P * jnp.sqrt(trace_inv)
    proj = wm * std_inv.reshape(1, C)                         # wm @ diag(1/std)
    return mean, proj


# ---------------------------------------------------------------------------
# Forward wrapper (mirrors CorItN_Single.forward)
# ---------------------------------------------------------------------------
def coritn_single_forward(X, running_mean, running_projection, *, T=5, eps=1e-3,
                          eps_bn=1e-5, momentum=0.1, training=True, tile_s=None):
    """X: (N, C, *spatial).  Returns (Xn, new_running_mean, new_running_projection)."""
    N, C = X.shape[0], X.shape[1]
    spatial = X.shape[2:]
    S = int(np.prod(spatial)) if len(spatial) else 1
    m = N * S
    x3 = X.reshape(N, C, S)                                   # free reshape, no transpose

    # Only f32 / bf16 feed the MXU natively; anything else is computed in f32.
    if x3.dtype not in (jnp.float32, jnp.bfloat16):
        x3 = x3.astype(jnp.float32)

    # Pad the spatial axis up to a multiple of 128.  Zero columns are exact no-ops for
    # sum/Gram (m uses the true S); projected padding is sliced off below.
    S_pad = ((S + 127) // 128) * 128
    if S_pad != S:
        x3 = jnp.pad(x3, ((0, 0), (0, 0), (0, S_pad - S)))

    vmem_limit = _vmem_limit_bytes()
    budget = int(vmem_limit * 0.7)                            # headroom for residents/scratch
    itemsize = jnp.dtype(x3.dtype).itemsize
    if tile_s is None:
        tile_s_stats = _pick_tile_s(S_pad, C, itemsize, budget, n_big_bufs=2)
        tile_s_proj = _pick_tile_s(S_pad, C, itemsize, budget, n_big_bufs=4)
    else:
        assert S_pad % tile_s == 0, (S_pad, tile_s)
        tile_s_stats = tile_s_proj = tile_s

    if training:
        assert m > 1, "CorItN_Single requires N * prod(spatial) > 1 in training mode"
        psum, pgram = _run_stats(x3, tile_s_stats, vmem_limit)
        mean, proj = _finalize_stats(psum, pgram, m, eps=eps, eps_bn=eps_bn, T=T)
        new_running_mean = (1.0 - momentum) * running_mean + momentum * mean
        new_running_projection = (1.0 - momentum) * running_projection + momentum * proj
    else:
        mean = running_mean.astype(jnp.float32)
        proj = running_projection.astype(jnp.float32)
        new_running_mean, new_running_projection = running_mean, running_projection

    bias = (proj @ mean).astype(jnp.float32)                  # fold mean into the projection
    proj_k = proj.astype(jnp.bfloat16) if x3.dtype == jnp.bfloat16 else proj.astype(jnp.float32)
    xn3 = _run_project(x3, proj_k, bias, tile_s_proj, x3.dtype, vmem_limit)
    if S_pad != S:
        xn3 = xn3[:, :, :S]
    Xn = xn3.reshape(X.shape).astype(X.dtype)
    return Xn, new_running_mean, new_running_projection


# ---------------------------------------------------------------------------
# Pure-JAX reference (sanity check only)
# ---------------------------------------------------------------------------
def coritn_ref(X, *, T=5, eps=1e-3, eps_bn=1e-5):
    N, C = X.shape[0], X.shape[1]
    x = jnp.swapaxes(X, 0, 1).reshape(C, -1).astype(jnp.float32)
    d, m = x.shape
    mean = jnp.mean(x, axis=-1, keepdims=True)
    xc = x - mean
    std = jnp.sqrt(jnp.sum(xc * xc, axis=-1, keepdims=True) / (m - 1)) + eps_bn
    xcs = xc / std
    eye = jnp.eye(d, dtype=jnp.float32)
    sigma = (eps / m) * eye + xcs @ xcs.T
    trace_inv = 1.0 / jnp.trace(sigma)
    sigma_n = sigma * trace_inv
    P = eye
    for _ in range(T):
        P = -0.75 * P + (P @ P @ P) @ sigma_n
    wm = P * jnp.sqrt(trace_inv)
    xn = wm @ xcs
    return jnp.swapaxes(xn.reshape((C, N) + X.shape[2:]), 0, 1)


# ---------------------------------------------------------------------------
# Demo
# ---------------------------------------------------------------------------
if __name__ == "__main__":
    key = jax.random.PRNGKey(0)
    N, C, H, W = 2, 8, 16, 16                  # num_features = 8, m = N*H*W = 512
    X = jax.random.normal(key, (N, C, H, W), dtype=jnp.float32)

    # Buffers as in __init__: zeros / identity.
    running_mean = jnp.zeros((C, 1), dtype=jnp.float32)
    running_projection = jnp.eye(C, dtype=jnp.float32)

    # Training-mode forward.  Force a 128-lane spatial tile so the demo exercises the
    # multi-tile accumulation / projection grids (production auto-picks bigger tiles).
    Xn, new_rm, new_rp = coritn_single_forward(
        X, running_mean, running_projection, T=5, eps=1e-3, momentum=0.1,
        training=True, tile_s=128)
    Xn = jax.block_until_ready(Xn)
    jax.block_until_ready(new_rm)
    jax.block_until_ready(new_rp)

    # Eval-mode forward with the updated running buffers (auto tile size).
    Xn_eval, _, _ = coritn_single_forward(X, new_rm, new_rp, training=False)
    Xn_eval = jax.block_until_ready(Xn_eval)

    # --- sanity checks against pure-JAX references (loose tol: MXU precision) ---
    ref = jax.block_until_ready(coritn_ref(X, T=5, eps=1e-3))
    err = float(jnp.max(jnp.abs(Xn - ref)))
    scale = float(jnp.max(jnp.abs(ref)))
    assert np.isfinite(err), "non-finite kernel output (train)"
    assert err <= 1e-3 + 5e-2 * scale, f"train mismatch vs reference: max abs err {err}"

    x2d = jnp.swapaxes(X, 0, 1).reshape(C, -1).astype(jnp.float32)
    ref_eval = jnp.swapaxes((new_rp @ (x2d - new_rm)).reshape((C, N, H, W)), 0, 1)
    err_e = float(jnp.max(jnp.abs(Xn_eval - ref_eval)))
    scale_e = float(jnp.max(jnp.abs(ref_eval)))
    assert np.isfinite(err_e), "non-finite kernel output (eval)"
    assert err_e <= 1e-3 + 5e-2 * scale_e, f"eval mismatch vs reference: max abs err {err_e}"

    print("KERNEL_OK")
</pallas_src>

<mosaic_0001>
module attributes {stable_mosaic.version = 11 : i64} {
  func.func @_coritn_stats_kernel(%arg0: i32, %arg1: i32, %arg2: memref<1x8x128xf32, #tpu.memory_space<vmem>>, %arg3: memref<1x8x1xf32, #tpu.memory_space<vmem>>, %arg4: memref<1x8x8xf32, #tpu.memory_space<vmem>>) attributes {dimension_semantics = [#tpu.dimension_semantics<parallel>, #tpu.dimension_semantics<arbitrary>], iteration_bounds = array<i64: 2, 2>, scalar_prefetch = 0 : i64, scratch_operands = 0 : i64, tpu.core_type = #tpu.core_type<tc>, window_params = [{transform_indices = @transform_0, window_bounds = array<i64: 1, 8, 128>}, {transform_indices = @transform_1, window_bounds = array<i64: 1, 8, 1>}, {transform_indices = @transform_2, window_bounds = array<i64: 1, 8, 8>}]} {
    %c0_i32 = arith.constant 0 : i32
    %0 = arith.cmpi eq, %arg1, %c0_i32 : i32
    %1 = arith.extui %0 : i1 to i32
    %c0_i32_0 = arith.constant 0 : i32
    %2 = arith.cmpi ne, %1, %c0_i32_0 : i32
    scf.if %2 {
      %cst_16 = arith.constant 0.000000e+00 : f32
      %20 = vector.broadcast %cst_16 : f32 to vector<8x1xf32>
      %c0_17 = arith.constant 0 : index
      %c0_18 = arith.constant 0 : index
      %c0_19 = arith.constant 0 : index
      %21 = vector.load %arg3[%c0_17, %c0_18, %c0_19] : memref<1x8x1xf32, #tpu.memory_space<vmem>>, vector<1x8x1xf32>
      %22 = vector.shape_cast %21 : vector<1x8x1xf32> to vector<8x1xf32>
      %23 = vector.shape_cast %20 : vector<8x1xf32> to vector<1x8x1xf32>
      tpu.vector_store %arg3[%c0_17, %c0_18, %c0_19], %23 {strides = array<i32>} : memref<1x8x1xf32, #tpu.memory_space<vmem>>, vector<1x8x1xf32>,
      %cst_20 = arith.constant 0.000000e+00 : f32
      %24 = vector.broadcast %cst_20 : f32 to vector<8x8xf32>
      %c0_21 = arith.constant 0 : index
      %c0_22 = arith.constant 0 : index
      %c0_23 = arith.constant 0 : index
      %25 = vector.load %arg4[%c0_21, %c0_22, %c0_23] : memref<1x8x8xf32, #tpu.memory_space<vmem>>, vector<1x8x8xf32>
      %26 = vector.shape_cast %25 : vector<1x8x8xf32> to vector<8x8xf32>
      %27 = vector.shape_cast %24 : vector<8x8xf32> to vector<1x8x8xf32>
      tpu.vector_store %arg4[%c0_21, %c0_22, %c0_23], %27 {strides = array<i32>} : memref<1x8x8xf32, #tpu.memory_space<vmem>>, vector<1x8x8xf32>,
    } else {
    }
    %c0 = arith.constant 0 : index
    %c0_1 = arith.constant 0 : index
    %c0_2 = arith.constant 0 : index
    %3 = vector.load %arg2[%c0, %c0_1, %c0_2] : memref<1x8x128xf32, #tpu.memory_space<vmem>>, vector<1x8x128xf32>
    %4 = vector.shape_cast %3 : vector<1x8x128xf32> to vector<8x128xf32>
    %c0_3 = arith.constant 0 : index
    %c0_4 = arith.constant 0 : index
    %c0_5 = arith.constant 0 : index
    %5 = vector.load %arg3[%c0_3, %c0_4, %c0_5] : memref<1x8x1xf32, #tpu.memory_space<vmem>>, vector<1x8x1xf32>
    %6 = vector.shape_cast %5 : vector<1x8x1xf32> to vector<8x1xf32>
    %cst = arith.constant dense<0.000000e+00> : vector<8xf32>
    %7 = vector.multi_reduction <add>, %4, %cst [1] : vector<8x128xf32> to vector<8xf32>
    %8 = vector.shape_cast %7 : vector<8xf32> to vector<8x1xf32>
    %9 = arith.addf %6, %8 : vector<8x1xf32>
    %c0_6 = arith.constant 0 : index
    %c0_7 = arith.constant 0 : index
    %c0_8 = arith.constant 0 : index
    %10 = vector.load %arg3[%c0_6, %c0_7, %c0_8] : memref<1x8x1xf32, #tpu.memory_space<vmem>>, vector<1x8x1xf32>
    %11 = vector.shape_cast %10 : vector<1x8x1xf32> to vector<8x1xf32>
    %12 = vector.shape_cast %9 : vector<8x1xf32> to vector<1x8x1xf32>
    tpu.vector_store %arg3[%c0_6, %c0_7, %c0_8], %12 {strides = array<i32>} : memref<1x8x1xf32, #tpu.memory_space<vmem>>, vector<1x8x1xf32>,
    %c0_9 = arith.constant 0 : index
    %c0_10 = arith.constant 0 : index
    %c0_11 = arith.constant 0 : index
    %13 = vector.load %arg4[%c0_9, %c0_10, %c0_11] : memref<1x8x8xf32, #tpu.memory_space<vmem>>, vector<1x8x8xf32>
    %14 = vector.shape_cast %13 : vector<1x8x8xf32> to vector<8x8xf32>
    %cst_12 = arith.constant dense<0.000000e+00> : vector<8x8xf32>
    %15 = tpu.matmul %4, %4, %cst_12 {dimension_numbers = #tpu.dot_dimension_numbers<[1], [1], [0], [0], [0, 0, 1, 0], [], []>} : vector<8x128xf32>, vector<8x128xf32>, vector<8x8xf32> -> vector<8x8xf32>
    %16 = arith.addf %14, %15 : vector<8x8xf32>
    %c0_13 = arith.constant 0 : index
    %c0_14 = arith.constant 0 : index
    %c0_15 = arith.constant 0 : index
    %17 = vector.load %arg4[%c0_13, %c0_14, %c0_15] : memref<1x8x8xf32, #tpu.memory_space<vmem>>, vector<1x8x8xf32>
    %18 = vector.shape_cast %17 : vector<1x8x8xf32> to vector<8x8xf32>
    %19 = vector.shape_cast %16 : vector<8x8xf32> to vector<1x8x8xf32>
    tpu.vector_store %arg4[%c0_13, %c0_14, %c0_15], %19 {strides = array<i32>} : memref<1x8x8xf32, #tpu.memory_space<vmem>>, vector<1x8x8xf32>,
    return
  }
  func.func @transform_0(%arg0: i32, %arg1: i32) -> (i32, i32, i32) {
    %c0_i32 = arith.constant 0 : i32
    %c0_i32_0 = arith.constant 0 : i32
    return %arg0, %c0_i32, %arg1 : i32, i32, i32
  }
  func.func @transform_1(%arg0: i32, %arg1: i32) -> (i32, i32, i32) {
    %c0_i32 = arith.constant 0 : i32
    %c0_i32_0 = arith.constant 0 : i32
    %c0_i32_1 = arith.constant 0 : i32
    return %arg0, %c0_i32, %c0_i32_0 : i32, i32, i32
  }
  func.func @transform_2(%arg0: i32, %arg1: i32) -> (i32, i32, i32) {
    %c0_i32 = arith.constant 0 : i32
    %c0_i32_0 = arith.constant 0 : i32
    %c0_i32_1 = arith.constant 0 : i32
    return %arg0, %c0_i32, %c0_i32_0 : i32, i32, i32
  }
}

</mosaic_0001>

<llo_original>
// kernel: tpu_custom_call.1
$region0: #{tpu_custom_call.1}
  #allocation0 [shape = 'u32[]', space=smem, size = 0x4, offset = 0x4, fixed_abs, tag = 'smem constant byte address 0x4 - core index']
  #allocation1 [shape = 'u32[144,128]{1,0:T(1,128)}', space=vmem, size = 0x12000, scoped, tag = 'internal scratch']
  %s0 = inlined_call_operand.hbm [shape: f32[2,8,256], index: 0, kind: input, shape index: {}]
  %s1 = inlined_call_operand.vmem [shape: f32[2,8,1], index: 1, kind: output, shape index: {0}]
  %s2 = inlined_call_operand.hbm [shape: f32[2,8,8], index: 2, kind: output, shape index: {1}]
  %3 = xla_tuple %s1, %s2
  %s4 = sld [smem:[#allocation0]]
  $region53: #{tpu_custom_call.1} parent=0
    _
  %s6 = ssub.s32 1, %s4
  %s7 = scalar_select 0, %s6, %s4
  $region1: #{tpu_custom_call.1} parent=0
    #allocation2 [shape = 'u8[8192]{0}', space=vmem, size = 0x2000, scoped, tag = 'input window, operand 0']
    #allocation3 [shape = 's32[2]{0}', space=sflag, size = 0x8, scoped, tag = 'scoped memory for tpu_custom_call.1']
    #allocation4 [shape = 's32[2]{0}', space=sflag, size = 0x8, scoped, tag = 'scoped memory for tpu_custom_call.1']
    #allocation5 [shape = 'u8[8192]{0}', space=vmem, size = 0x2000, scoped, tag = 'output window, operand 1']
    %8 = vsyncpa [#allocation3], 0
    %s9 = scalar_lea.sflag [#allocation3], 1
    %10 = vsyncpa %s9, 0
    %11 = vsyncpa [#allocation4], 0
    %s12 = scalar_lea.sflag [#allocation4], 1
    %13 = vsyncpa %s12, 0
    loop: start=0, step=1, limit=6
    $region2: #{tpu_custom_call.1} parent=1 // loop_pre_header
      _
    $region3: #{tpu_custom_call.1} parent=1 // loop_header
      %s15 = sphi 0, %s19
      %p16 = scmp.ge.s32.totalorder %s15, 6
      %s22 = sphi 0, %s34
      %s23 = sphi 0, %s30
      %s24 = sphi 0, %s22
      %s25 = sphi 0, %s23
      %s26 = sphi 0, %s24
      %s27 = sphi 0, %s25
      %s39 = sphi 0, %s41
      %s42 = sphi 0, %s39
      %s43 = sphi 0, %s42
      %s59 = sphi 0, %s43
      %s65 = sphi 0, %s67
      %s68 = sphi 0, %s65
      %s69 = sphi 0, %s68
      %s85 = sphi 0, %s69
      %s91 = sphi 0, %s93
      %s94 = sphi 0, %s91
      %s95 = sphi 0, %s94
      %s111 = sphi 0, %s95
    $region4: #{tpu_custom_call.1} parent=1 // loop_header_branch
      %18 = sbr.rel (%p16) target = $region8
    $region5: #{tpu_custom_call.1} parent=1 // loop_body
      %s20 = ssub.s32 %s15, 1
      %s21 = ssub.s32 %s15, 2
      %s28 = sadd.s32 1, %s23
      %p29 = scmp.ge.s32.totalorder %s28, 2
      %s30 = scalar_select %p29, 0, %s28
      %s31 = sadd.s32 1, %s22
      %s32 = scalar_select %p29, %s31, %s22
      %p33 = scmp.ge.s32.totalorder %s32, 2
      %s34 = scalar_select %p33, 0, %s32
      %s35 = ssub.s32 %s22, %s34
      %s36 = ssub.s32 %s23, %s30
      %s37 = sor.u32 %s35, %s36
      %p38 = scmp.eq.s32.totalorder %s37, 0
      %s40 = sadd.s32 %s39, 1
      %s41 = scalar_select %p38, %s39, %s40
      %p44 = pneg %p38
      %p45 = scmp.eq.s32.totalorder %s15, 3
      %p46 = por %p44, %p45
      %p47 = scmp.ne.s32.totalorder %s39, %s42
      %p48 = scmp.eq.s32.totalorder %s15, 0
      %p49 = por %p47, %p48
      %p50 = scmp.ne.s32.totalorder %s39, %s42
      %p51 = scmp.eq.s32.totalorder %s20, 3
      %p52 = por %p50, %p51
      %p53 = scmp.ne.s32.totalorder %s42, %s43
      %p54 = scmp.eq.s32.totalorder %s20, 0
      %p55 = por %p53, %p54
      %p56 = scmp.ne.s32.totalorder %s42, %s43
      %p57 = scmp.eq.s32.totalorder %s21, 3
      %p58 = por %p56, %p57
      %p60 = scmp.ne.s32.totalorder %s43, %s59
      %p61 = scmp.eq.s32.totalorder %s21, 0
      %p62 = por %p60, %p61
      %s63 = ssub.s32 %s22, %s34
      %p64 = scmp.eq.s32.totalorder %s63, 0
      %s66 = sadd.s32 %s65, 1
      %s67 = scalar_select %p64, %s65, %s66
      %p70 = pneg %p64
      %p71 = scmp.eq.s32.totalorder %s15, 3
      %p72 = por %p70, %p71
      %p73 = scmp.ne.s32.totalorder %s65, %s68
      %p74 = scmp.eq.s32.totalorder %s15, 0
      %p75 = por %p73, %p74
      %p76 = scmp.ne.s32.totalorder %s65, %s68
      %p77 = scmp.eq.s32.totalorder %s20, 3
      %p78 = por %p76, %p77
      %p79 = scmp.ne.s32.totalorder %s68, %s69
      %p80 = scmp.eq.s32.totalorder %s20, 0
      %p81 = por %p79, %p80
      %p82 = scmp.ne.s32.totalorder %s68, %s69
      %p83 = scmp.eq.s32.totalorder %s21, 3
      %p84 = por %p82, %p83
      %p86 = scmp.ne.s32.totalorder %s69, %s85
      %p87 = scmp.eq.s32.totalorder %s21, 0
      %p88 = por %p86, %p87
      %s89 = ssub.s32 %s22, %s34
      %p90 = scmp.eq.s32.totalorder %s89, 0
      %s92 = sadd.s32 %s91, 1
      %s93 = scalar_select %p90, %s91, %s92
      %p96 = pneg %p90
      %p97 = scmp.eq.s32.totalorder %s15, 3
      %p98 = por %p96, %p97
      %p99 = scmp.ne.s32.totalorder %s91, %s94
      %p100 = scmp.eq.s32.totalorder %s15, 0
      %p101 = por %p99, %p100
      %p102 = scmp.ne.s32.totalorder %s91, %s94
      %p103 = scmp.eq.s32.totalorder %s20, 3
      %p104 = por %p102, %p103
      %p105 = scmp.ne.s32.totalorder %s94, %s95
      %p106 = scmp.eq.s32.totalorder %s20, 0
      %p107 = por %p105, %p106
      %p108 = scmp.ne.s32.totalorder %s94, %s95
      %p109 = scmp.eq.s32.totalorder %s21, 3
      %p110 = por %p108, %p109
      %p112 = scmp.ne.s32.totalorder %s95, %s111
      %p113 = scmp.eq.s32.totalorder %s21, 0
      %p114 = por %p112, %p113
      %p115 = scmp.le.s32.totalorder 1, %s15
      %p116 = scmp.lt.s32.totalorder %s15, 5
      %p117 = pnand %p115, %p116
      %p118 = pneg %p117
      // Predicated region
      $region9: #{tpu_custom_call.1} parent=5 // pred_check
        _
      $region10: #{tpu_custom_call.1} parent=5 // pred_check_branch
        %120 = sbr.rel (%p117) target = $region12
      $region11: #{tpu_custom_call.1} parent=5 // pred_region
        %s121 = ssub.s32 %s15, 1
      $region12: #{tpu_custom_call.1} parent=5 // pred_fallthru
        _
      %p122 = scmp.lt.s32.totalorder %s15, 4
      // Predicated region
      $region13: #{tpu_custom_call.1} parent=5 // pred_check
        %p123 = pneg %p122
      $region14: #{tpu_custom_call.1} parent=5 // pred_check_branch
        %125 = sbr.rel (%p123) target = $region16
      $region15: #{tpu_custom_call.1} parent=5 // pred_region
        // Predicated region
        $region17: #{tpu_custom_call.1} parent=15 // pred_check
          %p126 = pneg %p49
        $region18: #{tpu_custom_call.1} parent=15 // pred_check_branch
          %128 = sbr.rel (%p126) target = $region20
        $region19: #{tpu_custom_call.1} parent=15 // pred_region
          %s129 = sand.u32 %s39, 1
          %s130 = scalar_lea.sflag [#allocation3], %s129
          %s131 = sand.u32 %s39, 1
          %s132 = smul.addr %s131, 8
          %s133 = scalar_lea.vmem [#allocation2], %s132
          %s135 = ssub.s32 128, 128
          %136 = vsyncadd %s130, %s135
          %s137 = smul.addr %s22, 2
          %s138 = sadd.s32 %s23, %s137
          %s139 = smul.addr %s138, 128
          %s140 = scalar_lea.hbm %s0, %s139
          %s142 = sshll.u32 %s133, 4
          %s143 = int_to_ptr.vmem [resolvable:$true] %s142
          %145 = dma.hbm_to_vmem [thread:$0]  %s140, 128, %s143, %s130
        $region20: #{tpu_custom_call.1} parent=15 // pred_fallthru
          _
      $region16: #{tpu_custom_call.1} parent=5 // pred_fallthru
        _
      %p146 = scmp.le.s32.totalorder 1, %s15
      %p147 = scmp.lt.s32.totalorder %s15, 5
      %p148 = pnand %p146, %p147
      %p149 = pneg %p148
      // Predicated region
      $region21: #{tpu_custom_call.1} parent=5 // pred_check
        _
      $region22: #{tpu_custom_call.1} parent=5 // pred_check_branch
        %151 = sbr.rel (%p148) target = $region24
      $region23: #{tpu_custom_call.1} parent=5 // pred_region
        %s152 = ssub.s32 %s15, 1
        %s153 = sand.u32 %s42, 1
        %s154 = scalar_lea.sflag [#allocation3], %s153
        %s155 = sand.u32 %s42, 1
        %s156 = smul.addr %s155, 8
        %s157 = scalar_lea.vmem [#allocation2], %s156
        // Predicated region
        $region25: #{tpu_custom_call.1} parent=23 // pred_check
          %p158 = pneg %p55
        $region26: #{tpu_custom_call.1} parent=23 // pred_check_branch
          %160 = sbr.rel (%p158) target = $region28
        $region27: #{tpu_custom_call.1} parent=23 // pred_region
          %161 = dma.done %s154, 128
        $region28: #{tpu_custom_call.1} parent=23 // pred_fallthru
          _
        %s162 = sand.u32 %s42, 1
        %s163 = scalar_lea.sflag [#allocation3], %s162
        %s164 = sand.u32 %s42, 1
        %s165 = smul.addr %s164, 8
        %s166 = scalar_lea.vmem [#allocation2], %s165
        %p167 = pneg %p55
        %p168 = pneg %p52
        %p169 = pneg %p81
        %p170 = pneg %p78
        %p171 = scmp.lt.s32.totalorder %s24, 1
        %s172 = scalar_select %p171, %s24, 1
        %s173 = smul.addr %s172, 8
        %s174 = scalar_lea.vmem %s1, %s173
        %p175 = pneg %p107
        %p176 = pneg %p104
        %s177 = sand.u32 %s94, 1
        %s178 = scalar_lea.sflag [#allocation4], %s177
        %s179 = sand.u32 %s94, 1
        %s180 = smul.addr %s179, 8
        %s181 = scalar_lea.vmem [#allocation5], %s180
        %p182 = scmp.lt.s32.totalorder %s24, 1
        %s183 = scalar_select %p182, %s24, 1
        %s184 = smul.addr %s183, 8
        %s185 = scalar_lea.vmem %s1, %s184
        %p186 = scmp.eq.s32.totalorder %s25, 0
        // Predicated region
        $region29: #{tpu_custom_call.1} parent=23 // pred_check
          %p187 = pneg %p186
        $region30: #{tpu_custom_call.1} parent=23 // pred_check_branch
          %189 = sbr.rel (%p187) target = $region32
        $region31: #{tpu_custom_call.1} parent=23 // pred_region
          %vm190 = vcmask 7168
          %191 = vst.msk [vmem:[%s185] sm:$0xff] %vm190, 0.0
          %vm192 = vcmask 64512
          %193 = vst.msk [vmem:[%s181] sm:$0xff] %vm192, 0.0
        $region32: #{tpu_custom_call.1} parent=23 // pred_fallthru
          _
        %v194 = vld [vmem:[%s157] sm:$0xff]
        %v195 = vld [vmem:[%s185] sm:$0xff]
        %196 = vadd.xlane.f32.xlu0 %v194
        %v197 = vpop.xlane.xlu0 %196
        %v198 = vadd.f32 %v195, %v197
        %vm199 = vcmask 7168
        %200 = vst.msk [vmem:[%s185] sm:$0xff] %vm199, %v198
        %v201 = vld [vmem:[%s181] sm:$0xff]
        %202 = vmatprep.subr.mxu0 0.0
        %203 = vmatpush1.xpose.msra.mxu0 %v194
        %204 = vmatprep.subr.mxu0 0.0
        %205 = vmatpush1.xpose.msra.mxu0 0.0
        %206 = vmatprep.subr.mxu0 0.0
        %207 = vmatpush1.xpose.msra.mxu0 0.0
        %208 = vmatprep.subr.mxu0 0.0
        %209 = vmatpush1.xpose.msra.mxu0 0.0
        %210 = vmatprep.subr.mxu0 0.0
        %211 = vmatpush1.xpose.msra.mxu0 0.0
        %212 = vmatprep.subr.mxu0 0.0
        %213 = vmatpush1.xpose.msra.mxu0 0.0
        %214 = vmatprep.subr.mxu0 0.0
        %215 = vmatpush1.xpose.msra.mxu0 0.0
        %216 = vmatprep.subr.mxu0 0.0
        %217 = vmatpush1.xpose.msra.mxu0 0.0
        %218 = vmatprep.subr.mxu0 0.0
        %219 = vmatpush1.xpose.msra.mxu0 0.0
        %220 = vmatprep.subr.mxu0 0.0
        %221 = vmatpush1.xpose.msra.mxu0 0.0
        %222 = vmatprep.subr.mxu0 0.0
        %223 = vmatpush1.xpose.msra.mxu0 0.0
        %224 = vmatprep.subr.mxu0 0.0
        %225 = vmatpush1.xpose.msra.mxu0 0.0
        %226 = vmatprep.subr.mxu0 0.0
        %227 = vmatpush1.xpose.msra.mxu0 0.0
        %228 = vmatprep.subr.mxu0 0.0
        %229 = vmatpush1.xpose.msra.mxu0 0.0
        %230 = vmatprep.subr.mxu0 0.0
        %231 = vmatpush1.xpose.msra.mxu0 0.0
        %232 = vmatprep.subr.mxu0 0.0
        %233 = vmatpush1.xpose.msra.mxu0 0.0
        %234 = vmatprep.subr.mxu0 0.0
        %235 = vmatpush1.xpose.msra.mxu0 0.0
        %236 = vmatprep.subr.mxu0 0.0
        %237 = vmatpush1.xpose.msra.mxu0 0.0
        %238 = vmatprep.subr.mxu0 0.0
        %239 = vmatpush1.xpose.msra.mxu0 0.0
        %240 = vmatprep.subr.mxu0 0.0
        %241 = vmatpush1.xpose.msra.mxu0 0.0
        %242 = vmatprep.subr.mxu0 0.0
        %243 = vmatpush1.xpose.msra.mxu0 0.0
        %244 = vmatprep.subr.mxu0 0.0
        %245 = vmatpush1.xpose.msra.mxu0 0.0
        %246 = vmatprep.subr.mxu0 0.0
        %247 = vmatpush1.xpose.msra.mxu0 0.0
        %248 = vmatprep.subr.mxu0 0.0
        %249 = vmatpush1.xpose.msra.mxu0 0.0
        %250 = vmatprep.subr.mxu0 0.0
        %251 = vmatpush1.xpose.msra.mxu0 0.0
        %252 = vmatprep.subr.mxu0 0.0
        %253 = vmatpush1.xpose.msra.mxu0 0.0
        %254 = vmatprep.subr.mxu0 0.0
        %255 = vmatpush1.xpose.msra.mxu0 0.0
        %256 = vmatprep.subr.mxu0 0.0
        %257 = vmatpush1.xpose.msra.mxu0 0.0
        %258 = vmatprep.subr.mxu0 0.0
        %259 = vmatpush1.xpose.msra.mxu0 0.0
        %260 = vmatprep.subr.mxu0 0.0
        %261 = vmatpush1.xpose.msra.mxu0 0.0
        %262 = vmatprep.subr.mxu0 0.0
        %263 = vmatpush1.xpose.msra.mxu0 0.0
        %264 = vmatprep.subr.mxu0 0.0
        %265 = vmatpush1.xpose.msra.mxu0 0.0
        %266 = vmatprep.mubr.f32.mxu0 0.0
        %267 = vmatmul.mubr.f32.gmra.mrb[0].mxu0 %v194
        %v268 = vpop.f32.mrb[0].mxu0
        %v269 = vadd.f32 0.0, %v268
        %v270 = vpop.f32.mrb[0].mxu0
        %271 = vdwg.mxu0
        %v272 = vadd.f32 %v201, %v269
        %vm273 = vcmask 64512
        %274 = vst.msk [vmem:[%s181] sm:$0xff] %vm273, %v272
        %p275 = scmp.lt.s32.totalorder %s24, 1
        %s276 = scalar_select %p275, %s24, 1
        %s277 = smul.addr %s276, 8
        %s278 = scalar_lea.vmem %s1, %s277
        %s279 = sand.u32 %s94, 1
        %s280 = scalar_lea.sflag [#allocation4], %s279
        %s281 = sand.u32 %s94, 1
        %s282 = smul.addr %s281, 8
        %s283 = scalar_lea.vmem [#allocation5], %s282
        // Predicated region
        $region33: #{tpu_custom_call.1} parent=23 // pred_check
          %p284 = pneg %p78
        $region34: #{tpu_custom_call.1} parent=23 // pred_check_branch
          %286 = sbr.rel (%p284) target = $region36
        $region35: #{tpu_custom_call.1} parent=23 // pred_region
          _
        $region36: #{tpu_custom_call.1} parent=23 // pred_fallthru
          _
        // Predicated region
        $region37: #{tpu_custom_call.1} parent=23 // pred_check
          %p287 = pneg %p104
        $region38: #{tpu_custom_call.1} parent=23 // pred_check_branch
          %289 = sbr.rel (%p287) target = $region40
        $region39: #{tpu_custom_call.1} parent=23 // pred_region
          %s291 = ssub.s32 128, 128
          %292 = vsyncadd %s280, %s291
          %s293 = smul.addr %s24, 128
          %s294 = scalar_lea.hbm %s2, %s293
          %s296 = sshll.u32 %s283, 4
          %s297 = int_to_ptr.vmem [resolvable:$true] %s296
          %299 = dma.vmem_to_hbm [thread:$0]  %s297, 128, %s294, %s280
        $region40: #{tpu_custom_call.1} parent=23 // pred_fallthru
          _
      $region24: #{tpu_custom_call.1} parent=5 // pred_fallthru
        _
      %p300 = scmp.le.s32.totalorder 2, %s15
      // Predicated region
      $region41: #{tpu_custom_call.1} parent=5 // pred_check
        %p301 = pneg %p300
      $region42: #{tpu_custom_call.1} parent=5 // pred_check_branch
        %303 = sbr.rel (%p301) target = $region44
      $region43: #{tpu_custom_call.1} parent=5 // pred_region
        %s304 = ssub.s32 %s15, 2
        // Predicated region
        $region45: #{tpu_custom_call.1} parent=43 // pred_check
          %p305 = pneg %p84
        $region46: #{tpu_custom_call.1} parent=43 // pred_check_branch
          %307 = sbr.rel (%p305) target = $region48
        $region47: #{tpu_custom_call.1} parent=43 // pred_region
          %p308 = scmp.lt.s32.totalorder %s26, 1
          %s309 = scalar_select %p308, %s26, 1
          %s310 = smul.addr %s309, 8
          %s311 = scalar_lea.vmem %s1, %s310
        $region48: #{tpu_custom_call.1} parent=43 // pred_fallthru
          _
        // Predicated region
        $region49: #{tpu_custom_call.1} parent=43 // pred_check
          %p312 = pneg %p110
        $region50: #{tpu_custom_call.1} parent=43 // pred_check_branch
          %314 = sbr.rel (%p312) target = $region52
        $region51: #{tpu_custom_call.1} parent=43 // pred_region
          %s315 = sand.u32 %s95, 1
          %s316 = scalar_lea.sflag [#allocation4], %s315
          %s317 = sand.u32 %s95, 1
          %s318 = smul.addr %s317, 8
          %s319 = scalar_lea.vmem [#allocation5], %s318
          %320 = dma.done %s316, 128
        $region52: #{tpu_custom_call.1} parent=43 // pred_fallthru
          _
      $region44: #{tpu_custom_call.1} parent=5 // pred_fallthru
        _
    $region6: #{tpu_custom_call.1} parent=1 // loop_footer
      %s19 = sadd.s32 1, %s15
    $region7: #{tpu_custom_call.1} parent=1 // loop_footer_branch
      %14 = sbr.rel target = $region3
    $region8: #{tpu_custom_call.1} parent=1 // loop_exit
      _
    %321 = vsyncpa [#allocation3], 1
    %s322 = scalar_lea.sflag [#allocation3], 1
    %323 = vsyncpa %s322, 1
    %324 = vsyncpa [#allocation4], 1
    %s325 = scalar_lea.sflag [#allocation4], 1
    %326 = vsyncpa %s325, 1

</llo_original>
